<compile_context>
chip_gen: v7x
topology: tpu7x:2x2x1
jax: 0.10.0
libtpu: 0.0.40
codegen_flags: <defaults>
</compile_context>

<pallas_src>
import functools

import jax
import jax.numpy as jnp
from jax import lax
from jax.experimental import pallas as pl
from jax.experimental.pallas import tpu as pltpu


def _group_norm_kernel(x_ref, gb_ref, o_ref, *, eps, cpg, hw, n_elems):
    # x_ref / o_ref: (TB, cpg*hw)  -- one group per row, lane dim = cpg*hw
    # gb_ref:        (TB, 2*cpg)   -- [gamma_0..gamma_{cpg-1}, beta_0..beta_{cpg-1}]
    f32 = jnp.float32
    tb = x_ref.shape[0]

    # Pass 1: per-group (per-row) mean.  Per-channel-slice re-reads keep only a
    # (TB, hw) f32 temporary live at a time.
    s1 = jnp.zeros((tb, 1), f32)
    for c in range(cpg):
        xs = x_ref[:, c * hw:(c + 1) * hw].astype(f32)
        s1 = s1 + jnp.sum(xs, axis=1, keepdims=True)
    mean = s1 * (1.0 / n_elems)

    # Pass 2: centered sum of squares (two-pass: numerically safe).
    s2 = jnp.zeros((tb, 1), f32)
    for c in range(cpg):
        xc = x_ref[:, c * hw:(c + 1) * hw].astype(f32) - mean
        s2 = s2 + jnp.sum(xc * xc, axis=1, keepdims=True)
    # torch.Tensor.var default is unbiased (divide by N-1), matching the module.
    # (max(..., 1) only guards the degenerate 1-element-group case.)
    var = s2 * (1.0 / max(n_elems - 1.0, 1.0))
    rstd = lax.rsqrt(var + eps)

    # Pass 3: fused affine, one FMA per element.  gamma/beta stay as (TB, 1)
    # column broadcasts per channel slice (no lane-repeat relayout).
    for c in range(cpg):
        g_c = gb_ref[:, c:c + 1].astype(f32)
        b_c = gb_ref[:, cpg + c:cpg + c + 1].astype(f32)
        scale = g_c * rstd                     # (TB, 1)
        bias = b_c - mean * scale              # (TB, 1)
        xs = x_ref[:, c * hw:(c + 1) * hw].astype(f32)
        o_ref[:, c * hw:(c + 1) * hw] = (xs * scale + bias).astype(o_ref.dtype)


def _round_up(a, m):
    return (a + m - 1) // m * m


def group_norm(x, gamma, beta, *, num_groups=16, eps=1e-5, target_block_bytes=None):
    bs, C, H, W = x.shape
    assert C % num_groups == 0, "channels must be divisible by groups"
    cpg = C // num_groups
    hw = H * W
    L = cpg * hw                      # elements per group (one row)
    rows = bs * num_groups
    n_elems = float(L)

    # Free (contiguous) reshape: one group per row, lane dim = cpg*hw.
    x2 = x.reshape(rows, L)

    # Per-group (gamma, beta) table, tiled across batch: (rows, 2*cpg).  Tiny.
    g_t = jnp.tile(gamma.reshape(num_groups, cpg), (bs, 1))
    b_t = jnp.tile(beta.reshape(num_groups, cpg), (bs, 1))
    gb = jnp.concatenate([g_t, b_t], axis=1).astype(jnp.float32)

    # --- tile sizing ---------------------------------------------------------
    itemsize = jnp.dtype(x.dtype).itemsize
    L_pad = _round_up(L, 128)
    hw_pad = _round_up(hw, 128)

    try:
        vmem_cap = pltpu.get_tpu_info().vmem_capacity_bytes
    except Exception:
        vmem_cap = 64 << 20           # conservative fallback (v7x-sized VMEM)

    if target_block_bytes is None:
        # ~2 MiB blocks on 64 MiB-VMEM parts (v7x), ~4 MiB otherwise; both sit
        # on the measured mem-bound plateau -- no point growing further.
        target_block_bytes = (2 << 20) if vmem_cap <= (64 << 20) else (4 << 20)

    # Candidate rows-per-block: divisors of `rows` that are sublane-aligned
    # (multiple of 8), plus the full axis (always a legal block dim).
    cands = sorted({d for d in range(8, rows + 1, 8) if rows % d == 0} | {rows})

    def blk_f32_bytes(tb):            # f32 lane-padded footprint (covers temps)
        return tb * L_pad * 4

    fitting = [d for d in cands if blk_f32_bytes(d) <= target_block_bytes]
    if fitting:
        tb = max(fitting)
        max_fit = tb
        # Megacore (v7x) load balance: prefer >= 4 blocks and an even count,
        # but never shrink blocks below ~512 KiB.
        for d in sorted(fitting, reverse=True):
            if blk_f32_bytes(d) < (512 << 10) and d != max_fit:
                break
            nb = rows // d
            if nb >= 4 and nb % 2 == 0:
                tb = d
                break
    else:
        # Even the smallest legal slab exceeds the target; take it and grow the
        # VMEM budget below.  (See TODO at top for the hw-split refinement.)
        tb = min(cands)

    num_blocks = rows // tb

    # --- VMEM budget: 2x(in + out + gb) pipeline buffers + f32 temporaries ----
    in_blk = tb * L_pad * itemsize
    out_blk = in_blk
    gb_blk = tb * _round_up(2 * cpg, 128) * 4
    tmp_blk = 2 * tb * hw_pad * 4                 # two live per-slice f32 temps
    vmem_needed = 2 * (in_blk + out_blk + gb_blk) + tmp_blk + (8 << 20)
    vmem_limit = int(min(max(vmem_needed, 32 << 20), (vmem_cap * 3) // 4))

    kernel = functools.partial(_group_norm_kernel, eps=eps, cpg=cpg, hw=hw,
                               n_elems=n_elems)

    out2 = pl.pallas_call(
        kernel,
        out_shape=jax.ShapeDtypeStruct((rows, L), x.dtype),
        grid=(num_blocks,),
        in_specs=[
            pl.BlockSpec((tb, L), lambda i: (i, 0)),
            pl.BlockSpec((tb, 2 * cpg), lambda i: (i, 0)),
        ],
        out_specs=pl.BlockSpec((tb, L), lambda i: (i, 0)),
        compiler_params=pltpu.CompilerParams(
            dimension_semantics=("parallel",),
            vmem_limit_bytes=vmem_limit),
    )(x2, gb)

    return out2.reshape(bs, C, H, W)


def group_norm_ref(x, gamma, beta, *, num_groups=16, eps=1e-5):
    # Pure-JAX reference mirroring the PyTorch module's forward exactly.
    bs, C, H, W = x.shape
    t = x.astype(jnp.float32).reshape(bs * num_groups, -1)
    mean = jnp.mean(t, axis=1, keepdims=True)
    var = jnp.var(t, axis=1, keepdims=True, ddof=1)  # torch.Tensor.var default
    t = (t - mean) / jnp.sqrt(var + eps)
    t = t.reshape(bs, C, H, W)
    return (gamma * t + beta).astype(x.dtype)


if __name__ == "__main__":
    key = jax.random.PRNGKey(0)
    k_x, k_g, k_b = jax.random.split(key, 3)

    bs, C, H, W = 2, 32, 16, 16
    groups = 16
    eps = 1e-5
    last_residual = False

    x = jax.random.normal(k_x, (bs, C, H, W), dtype=jnp.float32)

    # Deterministic parameter init, matching the nn.Module.__init__.
    gamma = (jnp.zeros((1, C, 1, 1), jnp.float32) if last_residual
             else jnp.ones((1, C, 1, 1), jnp.float32))
    beta = jnp.zeros((1, C, 1, 1), jnp.float32)

    out = group_norm(x, gamma, beta, num_groups=groups, eps=eps)
    out = jax.block_until_ready(out)
    ref = group_norm_ref(x, gamma, beta, num_groups=groups, eps=eps)
    assert jnp.allclose(out, ref, atol=2e-4, rtol=2e-4), "mismatch vs reference"

    # Extra check with non-trivial affine params (exercises the folded FMA path
    # and the per-channel gamma/beta table).
    gamma2 = jax.random.normal(k_g, (1, C, 1, 1), dtype=jnp.float32)
    beta2 = jax.random.normal(k_b, (1, C, 1, 1), dtype=jnp.float32)
    out2 = jax.block_until_ready(
        group_norm(x, gamma2, beta2, num_groups=groups, eps=eps))
    ref2 = group_norm_ref(x, gamma2, beta2, num_groups=groups, eps=eps)
    assert jnp.allclose(out2, ref2, atol=2e-4, rtol=2e-4), "mismatch (affine)"

    print("KERNEL_OK")
</pallas_src>

<mosaic_0001>
module attributes {stable_mosaic.version = 11 : i64} {
  func.func @_group_norm_kernel(%arg0: i32, %arg1: memref<32x512xf32, #tpu.memory_space<vmem>>, %arg2: memref<32x4xf32, #tpu.memory_space<vmem>>, %arg3: memref<32x512xf32, #tpu.memory_space<vmem>>) attributes {dimension_semantics = [#tpu.dimension_semantics<parallel>], iteration_bounds = array<i64: 1>, scalar_prefetch = 0 : i64, scratch_operands = 0 : i64, tpu.core_type = #tpu.core_type<tc>, window_params = [{transform_indices = @transform_0, window_bounds = array<i64: 32, 512>}, {transform_indices = @transform_1, window_bounds = array<i64: 32, 4>}, {transform_indices = @transform_2, window_bounds = array<i64: 32, 512>}]} {
    %cst = arith.constant 0.000000e+00 : f32
    %0 = vector.broadcast %cst : f32 to vector<32x1xf32>
    %c0 = arith.constant 0 : index
    %c0_0 = arith.constant 0 : index
    %1 = vector.load %arg1[%c0, %c0_0] : memref<32x512xf32, #tpu.memory_space<vmem>>, vector<32x256xf32>
    %cst_1 = arith.constant dense<0.000000e+00> : vector<32xf32>
    %2 = vector.multi_reduction <add>, %1, %cst_1 [1] : vector<32x256xf32> to vector<32xf32>
    %3 = vector.shape_cast %2 : vector<32xf32> to vector<32x1xf32>
    %4 = arith.addf %0, %3 : vector<32x1xf32>
    %c0_2 = arith.constant 0 : index
    %c256 = arith.constant 256 : index
    %5 = vector.load %arg1[%c0_2, %c256] : memref<32x512xf32, #tpu.memory_space<vmem>>, vector<32x256xf32>
    %cst_3 = arith.constant dense<0.000000e+00> : vector<32xf32>
    %6 = vector.multi_reduction <add>, %5, %cst_3 [1] : vector<32x256xf32> to vector<32xf32>
    %7 = vector.shape_cast %6 : vector<32xf32> to vector<32x1xf32>
    %8 = arith.addf %4, %7 : vector<32x1xf32>
    %cst_4 = arith.constant 0.001953125 : f32
    %9 = vector.broadcast %cst_4 : f32 to vector<32x1xf32>
    %10 = arith.mulf %8, %9 : vector<32x1xf32>
    %cst_5 = arith.constant 0.000000e+00 : f32
    %11 = vector.broadcast %cst_5 : f32 to vector<32x1xf32>
    %c0_6 = arith.constant 0 : index
    %c0_7 = arith.constant 0 : index
    %12 = vector.load %arg1[%c0_6, %c0_7] : memref<32x512xf32, #tpu.memory_space<vmem>>, vector<32x256xf32>
    %13 = vector.broadcast %10 : vector<32x1xf32> to vector<32x256xf32>
    %14 = arith.subf %12, %13 : vector<32x256xf32>
    %15 = arith.mulf %14, %14 : vector<32x256xf32>
    %cst_8 = arith.constant dense<0.000000e+00> : vector<32xf32>
    %16 = vector.multi_reduction <add>, %15, %cst_8 [1] : vector<32x256xf32> to vector<32xf32>
    %17 = vector.shape_cast %16 : vector<32xf32> to vector<32x1xf32>
    %18 = arith.addf %11, %17 : vector<32x1xf32>
    %c0_9 = arith.constant 0 : index
    %c256_10 = arith.constant 256 : index
    %19 = vector.load %arg1[%c0_9, %c256_10] : memref<32x512xf32, #tpu.memory_space<vmem>>, vector<32x256xf32>
    %20 = vector.broadcast %10 : vector<32x1xf32> to vector<32x256xf32>
    %21 = arith.subf %19, %20 : vector<32x256xf32>
    %22 = arith.mulf %21, %21 : vector<32x256xf32>
    %cst_11 = arith.constant dense<0.000000e+00> : vector<32xf32>
    %23 = vector.multi_reduction <add>, %22, %cst_11 [1] : vector<32x256xf32> to vector<32xf32>
    %24 = vector.shape_cast %23 : vector<32xf32> to vector<32x1xf32>
    %25 = arith.addf %18, %24 : vector<32x1xf32>
    %cst_12 = arith.constant 0.00195694715 : f32
    %26 = vector.broadcast %cst_12 : f32 to vector<32x1xf32>
    %27 = arith.mulf %25, %26 : vector<32x1xf32>
    %cst_13 = arith.constant 9.99999974E-6 : f32
    %28 = vector.broadcast %cst_13 : f32 to vector<32x1xf32>
    %29 = arith.addf %27, %28 : vector<32x1xf32>
    %30 = math.rsqrt %29 : vector<32x1xf32>
    %c0_14 = arith.constant 0 : index
    %c0_15 = arith.constant 0 : index
    %31 = vector.load %arg2[%c0_14, %c0_15] : memref<32x4xf32, #tpu.memory_space<vmem>>, vector<32x1xf32>
    %c0_16 = arith.constant 0 : index
    %c2 = arith.constant 2 : index
    %32 = vector.load %arg2[%c0_16, %c2] : memref<32x4xf32, #tpu.memory_space<vmem>>, vector<32x1xf32>
    %33 = arith.mulf %31, %30 : vector<32x1xf32>
    %34 = arith.mulf %10, %33 : vector<32x1xf32>
    %35 = arith.subf %32, %34 : vector<32x1xf32>
    %c0_17 = arith.constant 0 : index
    %c0_18 = arith.constant 0 : index
    %36 = vector.load %arg1[%c0_17, %c0_18] : memref<32x512xf32, #tpu.memory_space<vmem>>, vector<32x256xf32>
    %37 = vector.broadcast %33 : vector<32x1xf32> to vector<32x256xf32>
    %38 = arith.mulf %36, %37 : vector<32x256xf32>
    %39 = vector.broadcast %35 : vector<32x1xf32> to vector<32x256xf32>
    %40 = arith.addf %38, %39 : vector<32x256xf32>
    %c0_19 = arith.constant 0 : index
    %c0_20 = arith.constant 0 : index
    %41 = vector.load %arg3[%c0_19, %c0_20] : memref<32x512xf32, #tpu.memory_space<vmem>>, vector<32x256xf32>
    tpu.vector_store %arg3[%c0_19, %c0_20], %40 {strides = array<i32>} : memref<32x512xf32, #tpu.memory_space<vmem>>, vector<32x256xf32>,
    %c0_21 = arith.constant 0 : index
    %c1 = arith.constant 1 : index
    %42 = vector.load %arg2[%c0_21, %c1] : memref<32x4xf32, #tpu.memory_space<vmem>>, vector<32x1xf32>
    %c0_22 = arith.constant 0 : index
    %c3 = arith.constant 3 : index
    %43 = vector.load %arg2[%c0_22, %c3] : memref<32x4xf32, #tpu.memory_space<vmem>>, vector<32x1xf32>
    %44 = arith.mulf %42, %30 : vector<32x1xf32>
    %45 = arith.mulf %10, %44 : vector<32x1xf32>
    %46 = arith.subf %43, %45 : vector<32x1xf32>
    %c0_23 = arith.constant 0 : index
    %c256_24 = arith.constant 256 : index
    %47 = vector.load %arg1[%c0_23, %c256_24] : memref<32x512xf32, #tpu.memory_space<vmem>>, vector<32x256xf32>
    %48 = vector.broadcast %44 : vector<32x1xf32> to vector<32x256xf32>
    %49 = arith.mulf %47, %48 : vector<32x256xf32>
    %50 = vector.broadcast %46 : vector<32x1xf32> to vector<32x256xf32>
    %51 = arith.addf %49, %50 : vector<32x256xf32>
    %c0_25 = arith.constant 0 : index
    %c256_26 = arith.constant 256 : index
    %52 = vector.load %arg3[%c0_25, %c256_26] : memref<32x512xf32, #tpu.memory_space<vmem>>, vector<32x256xf32>
    tpu.vector_store %arg3[%c0_25, %c256_26], %51 {strides = array<i32>} : memref<32x512xf32, #tpu.memory_space<vmem>>, vector<32x256xf32>,
    return
  }
  func.func @transform_0(%arg0: i32) -> (i32, i32) {
    %c0_i32 = arith.constant 0 : i32
    %c0_i32_0 = arith.constant 0 : i32
    return %arg0, %c0_i32 : i32, i32
  }
  func.func @transform_1(%arg0: i32) -> (i32, i32) {
    %c0_i32 = arith.constant 0 : i32
    %c0_i32_0 = arith.constant 0 : i32
    return %arg0, %c0_i32 : i32, i32
  }
  func.func @transform_2(%arg0: i32) -> (i32, i32) {
    %c0_i32 = arith.constant 0 : i32
    %c0_i32_0 = arith.constant 0 : i32
    return %arg0, %c0_i32 : i32, i32
  }
}

</mosaic_0001>

<llo_original>
// kernel: tpu_custom_call.1
$region0: #{tpu_custom_call.1}
  #allocation0 [shape = 'u32[]', space=smem, size = 0x4, offset = 0x4, fixed_abs, tag = 'smem constant byte address 0x4 - core index']
  #allocation1 [shape = 'u32[144,128]{1,0:T(1,128)}', space=vmem, size = 0x12000, scoped, tag = 'internal scratch']
  %s0 = inlined_call_operand.hbm [shape: f32[32,512], index: 0, kind: input, shape index: {}]
  %s1 = inlined_call_operand.vmem [shape: f32[32,4], index: 1, kind: input, shape index: {}]
  %s2 = inlined_call_operand.hbm [shape: f32[32,512], index: 2, kind: output, shape index: {}]
  %s3 = sld [smem:[#allocation0]]
  $region22: #{tpu_custom_call.1} parent=0
    _
  %s5 = ssub.s32 1, %s3
  %s6 = scalar_select 0, %s5, %s3
  $region1: #{tpu_custom_call.1} parent=0
    #allocation2 [shape = 'u8[65536]{0}', space=vmem, size = 0x10000, scoped, tag = 'input window, operand 0, single buffered']
    #allocation3 [shape = 's32[1]{0}', space=sflag, size = 0x4, scoped, tag = 'scoped memory for tpu_custom_call.1']
    #allocation4 [shape = 's32[1]{0}', space=sflag, size = 0x4, scoped, tag = 'scoped memory for tpu_custom_call.1']
    #allocation5 [shape = 'u8[65536]{0}', space=vmem, size = 0x10000, scoped, tag = 'output window, operand 0, single buffered']
    %7 = vsyncpa [#allocation3], 0
    %8 = vsyncpa [#allocation4], 0
    // Predicated region
    $region2: #{tpu_custom_call.1} parent=1 // pred_check
      _
    $region3: #{tpu_custom_call.1} parent=1 // pred_check_branch
      %10 = sbr.rel (0) target = $region5
    $region4: #{tpu_custom_call.1} parent=1 // pred_region
      %s12 = ssub.s32 2048, 2048
      %13 = vsyncadd [#allocation3], %s12
      %s14 = sshll.u32 [#allocation2], 4
      %s15 = int_to_ptr.vmem [resolvable:$true] %s14
      %20 = dma.hbm_to_vmem [thread:$0]  %s0, 2048, %s15, [#allocation3], 512, 512, 32
    $region5: #{tpu_custom_call.1} parent=1 // pred_fallthru
      _
    // Predicated region
    $region6: #{tpu_custom_call.1} parent=1 // pred_check
      _
    $region7: #{tpu_custom_call.1} parent=1 // pred_check_branch
      %22 = sbr.rel (0) target = $region9
    $region8: #{tpu_custom_call.1} parent=1 // pred_region
      _
    $region9: #{tpu_custom_call.1} parent=1 // pred_fallthru
      _
    // Predicated region
    $region10: #{tpu_custom_call.1} parent=1 // pred_check
      _
    $region11: #{tpu_custom_call.1} parent=1 // pred_check_branch
      %24 = sbr.rel (0) target = $region13
    $region12: #{tpu_custom_call.1} parent=1 // pred_region
      %25 = dma.done [#allocation3], 2048
    $region13: #{tpu_custom_call.1} parent=1 // pred_fallthru
      _
    %v26 = vld [vmem:[#allocation2] sm:$0xff]
    %v27 = vld [vmem:[#allocation2 + $0x8] sm:$0xff]
    %v28 = vld [vmem:[#allocation2 + $0x20] sm:$0xff]
    %v29 = vld [vmem:[#allocation2 + $0x28] sm:$0xff]
    %v30 = vld [vmem:[#allocation2 + $0x40] sm:$0xff]
    %v31 = vld [vmem:[#allocation2 + $0x48] sm:$0xff]
    %v32 = vld [vmem:[#allocation2 + $0x60] sm:$0xff]
    %v33 = vld [vmem:[#allocation2 + $0x68] sm:$0xff]
    %v34 = vadd.f32 %v26, %v27
    %35 = vadd.xlane.f32.xlu0 %v34
    %v36 = vpop.xlane.xlu0 %35
    %v37 = vadd.f32 %v28, %v29
    %38 = vadd.xlane.f32.xlu0 %v37
    %v39 = vpop.xlane.xlu0 %38
    %v40 = vadd.f32 %v30, %v31
    %41 = vadd.xlane.f32.xlu0 %v40
    %v42 = vpop.xlane.xlu0 %41
    %v43 = vadd.f32 %v32, %v33
    %44 = vadd.xlane.f32.xlu0 %v43
    %v45 = vpop.xlane.xlu0 %44
    %v46 = vadd.f32 %v36, 0.0
    %v47 = vadd.f32 %v39, 0.0
    %v48 = vadd.f32 %v42, 0.0
    %v49 = vadd.f32 %v45, 0.0
    %v50 = vld [vmem:[#allocation2 + $0x10] sm:$0xff]
    %v51 = vld [vmem:[#allocation2 + $0x18] sm:$0xff]
    %v52 = vld [vmem:[#allocation2 + $0x30] sm:$0xff]
    %v53 = vld [vmem:[#allocation2 + $0x38] sm:$0xff]
    %v54 = vld [vmem:[#allocation2 + $0x50] sm:$0xff]
    %v55 = vld [vmem:[#allocation2 + $0x58] sm:$0xff]
    %v56 = vld [vmem:[#allocation2 + $0x70] sm:$0xff]
    %v57 = vld [vmem:[#allocation2 + $0x78] sm:$0xff]
    %v58 = vadd.f32 %v50, %v51
    %59 = vadd.xlane.f32.xlu0 %v58
    %v60 = vpop.xlane.xlu0 %59
    %v61 = vadd.f32 %v52, %v53
    %62 = vadd.xlane.f32.xlu0 %v61
    %v63 = vpop.xlane.xlu0 %62
    %v64 = vadd.f32 %v54, %v55
    %65 = vadd.xlane.f32.xlu0 %v64
    %v66 = vpop.xlane.xlu0 %65
    %v67 = vadd.f32 %v56, %v57
    %68 = vadd.xlane.f32.xlu0 %v67
    %v69 = vpop.xlane.xlu0 %68
    %v70 = vadd.f32 %v46, %v60
    %v71 = vadd.f32 %v47, %v63
    %v72 = vadd.f32 %v48, %v66
    %v73 = vadd.f32 %v49, %v69
    %v74 = vmul.f32 %v70, 0.001953125
    %v75 = vmul.f32 %v71, 0.001953125
    %v76 = vmul.f32 %v72, 0.001953125
    %v77 = vmul.f32 %v73, 0.001953125
    %v78 = vsub.f32 %v26, %v74
    %v79 = vsub.f32 %v27, %v74
    %v80 = vsub.f32 %v28, %v75
    %v81 = vsub.f32 %v29, %v75
    %v82 = vsub.f32 %v30, %v76
    %v83 = vsub.f32 %v31, %v76
    %v84 = vsub.f32 %v32, %v77
    %v85 = vsub.f32 %v33, %v77
    %v86 = vmul.f32 %v78, %v78
    %v87 = vmul.f32 %v79, %v79
    %v88 = vmul.f32 %v80, %v80
    %v89 = vmul.f32 %v81, %v81
    %v90 = vmul.f32 %v82, %v82
    %v91 = vmul.f32 %v83, %v83
    %v92 = vmul.f32 %v84, %v84
    %v93 = vmul.f32 %v85, %v85
    %v94 = vadd.f32 %v86, %v87
    %95 = vadd.xlane.f32.xlu0 %v94
    %v96 = vpop.xlane.xlu0 %95
    %v97 = vadd.f32 %v88, %v89
    %98 = vadd.xlane.f32.xlu0 %v97
    %v99 = vpop.xlane.xlu0 %98
    %v100 = vadd.f32 %v90, %v91
    %101 = vadd.xlane.f32.xlu0 %v100
    %v102 = vpop.xlane.xlu0 %101
    %v103 = vadd.f32 %v92, %v93
    %104 = vadd.xlane.f32.xlu0 %v103
    %v105 = vpop.xlane.xlu0 %104
    %v106 = vadd.f32 %v96, 0.0
    %v107 = vadd.f32 %v99, 0.0
    %v108 = vadd.f32 %v102, 0.0
    %v109 = vadd.f32 %v105, 0.0
    %v110 = vsub.f32 %v50, %v74
    %v111 = vsub.f32 %v51, %v74
    %v112 = vsub.f32 %v52, %v75
    %v113 = vsub.f32 %v53, %v75
    %v114 = vsub.f32 %v54, %v76
    %v115 = vsub.f32 %v55, %v76
    %v116 = vsub.f32 %v56, %v77
    %v117 = vsub.f32 %v57, %v77
    %v118 = vmul.f32 %v110, %v110
    %v119 = vmul.f32 %v111, %v111
    %v120 = vmul.f32 %v112, %v112
    %v121 = vmul.f32 %v113, %v113
    %v122 = vmul.f32 %v114, %v114
    %v123 = vmul.f32 %v115, %v115
    %v124 = vmul.f32 %v116, %v116
    %v125 = vmul.f32 %v117, %v117
    %v126 = vadd.f32 %v118, %v119
    %127 = vadd.xlane.f32.xlu0 %v126
    %v128 = vpop.xlane.xlu0 %127
    %v129 = vadd.f32 %v120, %v121
    %130 = vadd.xlane.f32.xlu0 %v129
    %v131 = vpop.xlane.xlu0 %130
    %v132 = vadd.f32 %v122, %v123
    %133 = vadd.xlane.f32.xlu0 %v132
    %v134 = vpop.xlane.xlu0 %133
    %v135 = vadd.f32 %v124, %v125
    %136 = vadd.xlane.f32.xlu0 %v135
    %v137 = vpop.xlane.xlu0 %136
    %v138 = vadd.f32 %v106, %v128
    %v139 = vadd.f32 %v107, %v131
    %v140 = vadd.f32 %v108, %v134
    %v141 = vadd.f32 %v109, %v137
    %v142 = vmul.f32 %v138, 0.0019569471
    %v143 = vmul.f32 %v139, 0.0019569471
    %v144 = vmul.f32 %v140, 0.0019569471
    %v145 = vmul.f32 %v141, 0.0019569471
    %v146 = vadd.f32 %v142, 1e-05
    %v147 = vadd.f32 %v143, 1e-05
    %v148 = vadd.f32 %v144, 1e-05
    %v149 = vadd.f32 %v145, 1e-05
    %v150 = vrsqrt.pop %v146
    %v151 = vrsqrt.pop %v147
    %v152 = vrsqrt.pop %v148
    %v153 = vrsqrt.pop %v149
    %v154 = vld [vmem:[%s1] sm:$0xff]
    %v155 = vld [vmem:[%s1 + $0x8] sm:$0xff]
    %v156 = vld [vmem:[%s1 + $0x10] sm:$0xff]
    %v157 = vld [vmem:[%s1 + $0x18] sm:$0xff]
    %v158 = vmul.f32 %v154, %v150
    %v159 = vmul.f32 %v155, %v151
    %v160 = vmul.f32 %v156, %v152
    %v161 = vmul.f32 %v157, %v153
    %v162 = vmul.f32 %v74, %v158
    %v163 = vmul.f32 %v75, %v159
    %v164 = vmul.f32 %v76, %v160
    %v165 = vmul.f32 %v77, %v161
    %170 = vrot.lane.b32.xlu0 %v162, 2
    %v171 = vpop.permute.xlu0 %170
    %172 = vrot.lane.b32.xlu0 %v163, 2
    %v173 = vpop.permute.xlu0 %172
    %174 = vrot.lane.b32.xlu0 %v164, 2
    %v175 = vpop.permute.xlu0 %174
    %176 = vrot.lane.b32.xlu0 %v165, 2
    %v177 = vpop.permute.xlu0 %176
    %v182 = vsub.f32 %v154, %v171
    %v183 = vsub.f32 %v155, %v173
    %v184 = vsub.f32 %v156, %v175
    %v185 = vsub.f32 %v157, %v177
    %187 = vset.pattern.permute.xlu0 0
    %188 = vperm.xlu0 %187, %v158
    %v189 = vpop.permute.xlu0 %188
    %192 = vset.pattern.permute.xlu0 0
    %193 = vperm.xlu0 %192, %v159
    %v194 = vpop.permute.xlu0 %193
    %197 = vset.pattern.permute.xlu0 0
    %198 = vperm.xlu0 %197, %v160
    %v199 = vpop.permute.xlu0 %198
    %202 = vset.pattern.permute.xlu0 0
    %203 = vperm.xlu0 %202, %v161
    %v204 = vpop.permute.xlu0 %203
    %v206 = vmul.f32 %v26, %v189
    %v207 = vmul.f32 %v27, %v189
    %v208 = vmul.f32 %v28, %v194
    %v209 = vmul.f32 %v29, %v194
    %v210 = vmul.f32 %v30, %v199
    %v211 = vmul.f32 %v31, %v199
    %v212 = vmul.f32 %v32, %v204
    %v213 = vmul.f32 %v33, %v204
    %215 = vset.pattern.permute.xlu0 2
    %216 = vperm.xlu0 %215, %v182
    %v217 = vpop.permute.xlu0 %216
    %220 = vset.pattern.permute.xlu0 2
    %221 = vperm.xlu0 %220, %v183
    %v222 = vpop.permute.xlu0 %221
    %225 = vset.pattern.permute.xlu0 2
    %226 = vperm.xlu0 %225, %v184
    %v227 = vpop.permute.xlu0 %226
    %230 = vset.pattern.permute.xlu0 2
    %231 = vperm.xlu0 %230, %v185
    %v232 = vpop.permute.xlu0 %231
    %v234 = vadd.f32 %v206, %v217
    %v235 = vadd.f32 %v207, %v217
    %v236 = vadd.f32 %v208, %v222
    %v237 = vadd.f32 %v209, %v222
    %v238 = vadd.f32 %v210, %v227
    %v239 = vadd.f32 %v211, %v227
    %v240 = vadd.f32 %v212, %v232
    %v241 = vadd.f32 %v213, %v232
    %242 = vst [vmem:[#allocation5] sm:$0xff] %v234
    %243 = vst [vmem:[#allocation5 + $0x8] sm:$0xff] %v235
    %244 = vst [vmem:[#allocation5 + $0x20] sm:$0xff] %v236
    %245 = vst [vmem:[#allocation5 + $0x28] sm:$0xff] %v237
    %246 = vst [vmem:[#allocation5 + $0x40] sm:$0xff] %v238
    %247 = vst [vmem:[#allocation5 + $0x48] sm:$0xff] %v239
    %248 = vst [vmem:[#allocation5 + $0x60] sm:$0xff] %v240
    %249 = vst [vmem:[#allocation5 + $0x68] sm:$0xff] %v241
    %v250 = vld [vmem:[%s1] sm:$0xff]
    %v251 = vld [vmem:[%s1 + $0x8] sm:$0xff]
    %v252 = vld [vmem:[%s1 + $0x10] sm:$0xff]
    %v253 = vld [vmem:[%s1 + $0x18] sm:$0xff]
    %v254 = vmul.f32 %v250, %v150
    %v255 = vmul.f32 %v251, %v151
    %v256 = vmul.f32 %v252, %v152
    %v257 = vmul.f32 %v253, %v153
    %v258 = vmul.f32 %v74, %v254
    %v259 = vmul.f32 %v75, %v255
    %v260 = vmul.f32 %v76, %v256
    %v261 = vmul.f32 %v77, %v257
    %266 = vrot.lane.b32.xlu0 %v258, 2
    %v267 = vpop.permute.xlu0 %266
    %268 = vrot.lane.b32.xlu0 %v259, 2
    %v269 = vpop.permute.xlu0 %268
    %270 = vrot.lane.b32.xlu0 %v260, 2
    %v271 = vpop.permute.xlu0 %270
    %272 = vrot.lane.b32.xlu0 %v261, 2
    %v273 = vpop.permute.xlu0 %272
    %v278 = vsub.f32 %v250, %v267
    %v279 = vsub.f32 %v251, %v269
    %v280 = vsub.f32 %v252, %v271
    %v281 = vsub.f32 %v253, %v273
    %v282 = vld [vmem:[#allocation2 + $0x10] sm:$0xff]
    %v283 = vld [vmem:[#allocation2 + $0x18] sm:$0xff]
    %v284 = vld [vmem:[#allocation2 + $0x30] sm:$0xff]
    %v285 = vld [vmem:[#allocation2 + $0x38] sm:$0xff]
    %v286 = vld [vmem:[#allocation2 + $0x50] sm:$0xff]
    %v287 = vld [vmem:[#allocation2 + $0x58] sm:$0xff]
    %v288 = vld [vmem:[#allocation2 + $0x70] sm:$0xff]
    %v289 = vld [vmem:[#allocation2 + $0x78] sm:$0xff]
    %291 = vset.pattern.permute.xlu0 1
    %292 = vperm.xlu0 %291, %v254
    %v293 = vpop.permute.xlu0 %292
    %296 = vset.pattern.permute.xlu0 1
    %297 = vperm.xlu0 %296, %v255
    %v298 = vpop.permute.xlu0 %297
    %301 = vset.pattern.permute.xlu0 1
    %302 = vperm.xlu0 %301, %v256
    %v303 = vpop.permute.xlu0 %302
    %306 = vset.pattern.permute.xlu0 1
    %307 = vperm.xlu0 %306, %v257
    %v308 = vpop.permute.xlu0 %307
    %v310 = vmul.f32 %v282, %v293
    %v311 = vmul.f32 %v283, %v293
    %v312 = vmul.f32 %v284, %v298
    %v313 = vmul.f32 %v285, %v298
    %v314 = vmul.f32 %v286, %v303
    %v315 = vmul.f32 %v287, %v303
    %v316 = vmul.f32 %v288, %v308
    %v317 = vmul.f32 %v289, %v308
    %319 = vset.pattern.permute.xlu0 3
    %320 = vperm.xlu0 %319, %v278
    %v321 = vpop.permute.xlu0 %320
    %324 = vset.pattern.permute.xlu0 3
    %325 = vperm.xlu0 %324, %v279
    %v326 = vpop.permute.xlu0 %325
    %329 = vset.pattern.permute.xlu0 3
    %330 = vperm.xlu0 %329, %v280
    %v331 = vpop.permute.xlu0 %330
    %334 = vset.pattern.permute.xlu0 3
    %335 = vperm.xlu0 %334, %v281
    %v336 = vpop.permute.xlu0 %335
    %v338 = vadd.f32 %v310, %v321
    %v339 = vadd.f32 %v311, %v321
    %v340 = vadd.f32 %v312, %v326
    %v341 = vadd.f32 %v313, %v326
    %v342 = vadd.f32 %v314, %v331
    %v343 = vadd.f32 %v315, %v331
    %v344 = vadd.f32 %v316, %v336
    %v345 = vadd.f32 %v317, %v336
    %346 = vst [vmem:[#allocation5 + $0x10] sm:$0xff] %v338
    %347 = vst [vmem:[#allocation5 + $0x18] sm:$0xff] %v339
    %348 = vst [vmem:[#allocation5 + $0x30] sm:$0xff] %v340
    %349 = vst [vmem:[#allocation5 + $0x38] sm:$0xff] %v341
    %350 = vst [vmem:[#allocation5 + $0x50] sm:$0xff] %v342
    %351 = vst [vmem:[#allocation5 + $0x58] sm:$0xff] %v343
    %352 = vst [vmem:[#allocation5 + $0x70] sm:$0xff] %v344
    %353 = vst [vmem:[#allocation5 + $0x78] sm:$0xff] %v345
    // Predicated region
    $region14: #{tpu_custom_call.1} parent=1 // pred_check
      _
    $region15: #{tpu_custom_call.1} parent=1 // pred_check_branch
      %355 = sbr.rel (0) target = $region17
    $region16: #{tpu_custom_call.1} parent=1 // pred_region
      %s357 = ssub.s32 2048, 2048
      %358 = vsyncadd [#allocation4], %s357
      %s359 = sshll.u32 [#allocation5], 4
      %s360 = int_to_ptr.vmem [resolvable:$true] %s359
      %365 = dma.vmem_to_hbm [thread:$0]  %s360, 2048, %s2, [#allocation4], 512, 512, 32
    $region17: #{tpu_custom_call.1} parent=1 // pred_fallthru
      _
    // Predicated region
    $region18: #{tpu_custom_call.1} parent=1 // pred_check
      _
    $region19: #{tpu_custom_call.1} parent=1 // pred_check_branch
      %367 = sbr.rel (0) target = $region21
    $region20: #{tpu_custom_call.1} parent=1 // pred_region
      %368 = dma.done [#allocation4], 2048
    $region21: #{tpu_custom_call.1} parent=1 // pred_fallthru
      _
    %369 = vsyncpa [#allocation3], 1
    %370 = vsyncpa [#allocation4], 1

</llo_original>
